<compile_context>
chip_gen: v5e
topology: v5e:2x2
jax: 0.10.0
libtpu: 0.0.40
codegen_flags: <defaults>
</compile_context>

<pallas_src>
import functools

import jax
import jax.numpy as jnp
from jax.experimental import pallas as pl
from jax.experimental.pallas import tpu as pltpu

_LANE = 128


def _log_relu_kernel(x_ref, o_ref):
    # log(1 + relu(x)) == log1p(max(x, 0)); scalar zero avoids materializing a
    # broadcast constant tile (JAX does not CSE broadcast_in_dim).
    o_ref[...] = jnp.log1p(jnp.maximum(x_ref[...], 0))


def _sublane_multiple(dtype) -> int:
    # 32-bit packs (8,128) per vreg; bf16/f16 -> 16 sublanes; int8/fp8 -> 32.
    itemsize = jnp.dtype(dtype).itemsize
    return max(8, 32 // itemsize)


@functools.lru_cache(maxsize=1)
def _tpu_block_config():
    """Returns (target_block_bytes, min_grid_steps) tuned per TPU generation.

    Double-buffered input + output => peak VMEM ~= 4 * block bytes, which must
    stay under the scoped-VMEM default (16 MiB v5e, 32 MiB v6e/v7x).
    """
    try:
        kind = jax.devices()[0].device_kind.lower()
    except Exception:  # no devices / unexpected backend: conservative defaults
        kind = ""
    if "v7" in kind or "7x" in kind:
        # 3.2 TB/s HBM: a 6 MiB block is ~3.7 us of HBM time, so the ~0.35 us
        # per-step overhead drops below 10%. 4 x 6 MiB = 24 MiB < 32 MiB scoped.
        # min 2 grid steps so the "parallel" axis spans both TensorCores.
        return 6 * 1024 * 1024, 2
    if "v6" in kind:
        # 16 MiB of double-buffered tiles < 32 MiB scoped default.
        return 4 * 1024 * 1024, 1
    # v5e (0.82 TB/s, 16 MiB scoped VMEM) and unknown chips: 2 MiB is plenty
    # (per-step overhead already <10%) and 8 MiB double-buffered is safe.
    return 2 * 1024 * 1024, 1


def _run_slab(slab, *, target_block_bytes, min_grid_steps, donate):
    """Runs the elementwise kernel over a lane-dense (rows, 128) slab."""
    rows, lanes = slab.shape
    dtype = slab.dtype
    itemsize = jnp.dtype(dtype).itemsize
    sub = _sublane_multiple(dtype)

    # ~target_block_bytes of rows per block, rounded to the sublane granule.
    tr = max(sub, target_block_bytes // (lanes * itemsize))
    tr = (tr // sub) * sub

    # Force >= min_grid_steps grid steps (v7x: split across both TensorCores)
    # whenever the slab is big enough to split on a sublane boundary.
    if min_grid_steps > 1 and rows >= min_grid_steps * sub:
        cap = max(sub, ((rows // min_grid_steps) // sub) * sub)
        tr = min(tr, cap)

    if tr >= rows:
        tr = rows  # single block; "block dim == full array dim" is always legal
    grid = (pl.cdiv(rows, tr),)  # ragged last block is masked by Pallas

    return pl.pallas_call(
        _log_relu_kernel,
        out_shape=jax.ShapeDtypeStruct((rows, lanes), dtype),
        grid_spec=pltpu.PrefetchScalarGridSpec(
            num_scalar_prefetch=0,
            grid=grid,
            in_specs=[pl.BlockSpec((tr, lanes), lambda i: (i, 0))],
            out_specs=pl.BlockSpec((tr, lanes), lambda i: (i, 0)),
        ),
        compiler_params=pltpu.CompilerParams(
            dimension_semantics=("parallel",),  # shards grid across TCs on v7x
        ),
        # Only alias when the caller actually donates x; otherwise XLA inserts
        # a defensive copy that would cost an extra full HBM pass.
        input_output_aliases=({0: 0} if donate else {}),
    )(slab)


def log_relu(x: jax.Array, *, target_block_bytes: int | None = None,
             min_grid_steps: int | None = None,
             donate_input: bool = False) -> jax.Array:
    """Elementwise log(1 + relu(x)) via a Pallas TPU kernel.

    Matches torch.log(1 + F.relu(x)) for any shape / float dtype.
    """
    orig_shape = x.shape
    n = x.size
    if n == 0:
        return x

    auto_bytes, auto_steps = _tpu_block_config()
    if target_block_bytes is None:
        target_block_bytes = auto_bytes
    if min_grid_steps is None:
        min_grid_steps = auto_steps

    run = functools.partial(
        _run_slab,
        target_block_bytes=target_block_bytes,
        min_grid_steps=min_grid_steps,
        donate=donate_input,
    )

    flat = x.reshape(-1)

    if n % _LANE == 0:
        # Fast path: lane-dense reshape only (free) — single HBM read + write.
        out = run(flat.reshape(n // _LANE, _LANE))
        return out.reshape(orig_shape)

    # Ragged path: kernel on the 128-aligned prefix, plain jnp on the tiny
    # (<128-element) tail. No full-array pad / un-pad passes anymore; the
    # final concatenate is the only extra pass over the prefix.
    prefix = (n // _LANE) * _LANE
    tail = jnp.log1p(jnp.maximum(flat[prefix:], 0))
    if prefix == 0:
        return tail.reshape(orig_shape)
    head = run(flat[:prefix].reshape(prefix // _LANE, _LANE)).reshape(-1)
    return jnp.concatenate([head, tail]).reshape(orig_shape)


if __name__ == "__main__":
    key = jax.random.PRNGKey(0)

    # Small NCHW activation consistent with the conv-net module.
    x = jax.random.normal(key, (2, 4, 16, 16), dtype=jnp.float32)
    y = log_relu(x)
    jax.block_until_ready(y)
    y_ref = jnp.log1p(jnp.maximum(x, 0.0))
    assert y.shape == x.shape and y.dtype == x.dtype
    assert jnp.allclose(y, y_ref, atol=1e-6, rtol=1e-6)

    # Ragged shape (5*9*9 = 405 = 3*128 + 21) exercises the prefix + tail path.
    k2 = jax.random.PRNGKey(0)
    x2 = jax.random.normal(k2, (5, 9, 9), dtype=jnp.float32)
    y2 = log_relu(x2)
    jax.block_until_ready(y2)
    y2_ref = jnp.log1p(jnp.maximum(x2, 0.0))
    assert y2.shape == x2.shape and y2.dtype == x2.dtype
    assert jnp.allclose(y2, y2_ref, atol=1e-6, rtol=1e-6)

    # Sub-128-element ragged shape hits the pure-jnp tail-only branch.
    x4 = jax.random.normal(k2, (3, 5, 7), dtype=jnp.float32)
    y4 = log_relu(x4)
    jax.block_until_ready(y4)
    assert jnp.allclose(y4, jnp.log1p(jnp.maximum(x4, 0.0)), atol=1e-6, rtol=1e-6)

    # bf16 exercises the dtype-aware (16-sublane) tiling.
    x3 = jax.random.normal(k2, (2, 4, 16, 16), dtype=jnp.bfloat16)
    y3 = log_relu(x3)
    jax.block_until_ready(y3)
    y3_ref = jnp.log1p(jnp.maximum(x3.astype(jnp.float32), 0.0)).astype(jnp.bfloat16)
    assert y3.shape == x3.shape and y3.dtype == x3.dtype
    assert jnp.allclose(y3.astype(jnp.float32), y3_ref.astype(jnp.float32),
                        atol=2e-2, rtol=2e-2)

    print("KERNEL_OK")
</pallas_src>

<mosaic_0001>
module attributes {stable_mosaic.version = 11 : i64} {
  func.func @_log_relu_kernel(%arg0: i32, %arg1: memref<16x128xf32, #tpu.memory_space<vmem>>, %arg2: memref<16x128xf32, #tpu.memory_space<vmem>>) attributes {dimension_semantics = [#tpu.dimension_semantics<parallel>], iteration_bounds = array<i64: 1>, scalar_prefetch = 0 : i64, scratch_operands = 0 : i64, tpu.core_type = #tpu.core_type<tc>, window_params = [{transform_indices = @transform_0, window_bounds = array<i64: 16, 128>}, {transform_indices = @transform_1, window_bounds = array<i64: 16, 128>}]} {
    %c0 = arith.constant 0 : index
    %c0_0 = arith.constant 0 : index
    %0 = vector.load %arg1[%c0, %c0_0] : memref<16x128xf32, #tpu.memory_space<vmem>>, vector<16x128xf32>
    %cst = arith.constant 0.000000e+00 : f32
    %1 = vector.broadcast %cst : f32 to vector<16x128xf32>
    %2 = arith.maximumf %0, %1 : vector<16x128xf32>
    %3 = math.log1p %2 : vector<16x128xf32>
    %c0_1 = arith.constant 0 : index
    %c0_2 = arith.constant 0 : index
    %4 = vector.load %arg2[%c0_1, %c0_2] : memref<16x128xf32, #tpu.memory_space<vmem>>, vector<16x128xf32>
    tpu.vector_store %arg2[%c0_1, %c0_2], %3 {strides = array<i32>} : memref<16x128xf32, #tpu.memory_space<vmem>>, vector<16x128xf32>,
    return
  }
  func.func @transform_0(%arg0: i32) -> (i32, i32) {
    %c0_i32 = arith.constant 0 : i32
    %c0_i32_0 = arith.constant 0 : i32
    return %arg0, %c0_i32 : i32, i32
  }
  func.func @transform_1(%arg0: i32) -> (i32, i32) {
    %c0_i32 = arith.constant 0 : i32
    %c0_i32_0 = arith.constant 0 : i32
    return %arg0, %c0_i32 : i32, i32
  }
}

</mosaic_0001>

<llo_original>
// kernel: tpu_custom_call.1
$region0: #{tpu_custom_call.1}
  #allocation0 [shape = 'u32[]', space=smem, size = 0x4, offset = 0x4, fixed_abs, tag = 'smem constant byte address 0x4 - core index']
  #allocation1 [shape = 'u32[72,128]{1,0:T(1,128)}', space=vmem, size = 0x9000, scoped, tag = 'internal scratch']
  %s0 = inlined_call_operand.hbm [shape: f32[16,128], index: 0, kind: input, shape index: {}]
  %s1 = inlined_call_operand.hbm [shape: f32[16,128], index: 1, kind: output, shape index: {}]
  %s2 = sld [smem:[#allocation0]]
  $region18: #{tpu_custom_call.1} parent=0
    _
  %s4 = ssub.s32 1, %s2
  %s5 = scalar_select 0, %s4, %s2
  $region1: #{tpu_custom_call.1} parent=0
    #allocation2 [shape = 'u8[8192]{0}', space=vmem, size = 0x2000, scoped, tag = 'input window, operand 0, single buffered']
    #allocation3 [shape = 's32[1]{0}', space=sflag, size = 0x4, scoped, tag = 'scoped memory for tpu_custom_call.1']
    #allocation4 [shape = 's32[1]{0}', space=sflag, size = 0x4, scoped, tag = 'scoped memory for tpu_custom_call.1']
    #allocation5 [shape = 'u8[8192]{0}', space=vmem, size = 0x2000, scoped, tag = 'output window, operand 0, single buffered']
    %6 = vsyncpa [#allocation3], 0
    %7 = vsyncpa [#allocation4], 0
    // Predicated region
    $region2: #{tpu_custom_call.1} parent=1 // pred_check
      _
    $region3: #{tpu_custom_call.1} parent=1 // pred_check_branch
      %9 = sbr.rel (0) target = $region5
    $region4: #{tpu_custom_call.1} parent=1 // pred_region
      %11 = vsyncadd [#allocation3], 0
      %s12 = sshll.u32 %s0, 4
      %s13 = int_to_ptr.hbm [resolvable:$true] %s12
      %s14 = sshll.u32 [#allocation2], 4
      %s15 = int_to_ptr.vmem [resolvable:$true] %s14
      %20 = dma.hbm_to_vmem [thread:$0]  %s13, 256, %s15, [#allocation3], 128, 128, 8
    $region5: #{tpu_custom_call.1} parent=1 // pred_fallthru
      _
    // Predicated region
    $region6: #{tpu_custom_call.1} parent=1 // pred_check
      _
    $region7: #{tpu_custom_call.1} parent=1 // pred_check_branch
      %22 = sbr.rel (0) target = $region9
    $region8: #{tpu_custom_call.1} parent=1 // pred_region
      %24 = dma.done [#allocation3], 256
    $region9: #{tpu_custom_call.1} parent=1 // pred_fallthru
      _
    %v25 = vld [vmem:[#allocation2] sm:$0xff]
    %v26 = vld [vmem:[#allocation2 + $0x8] sm:$0xff]
    %v27 = vmax.f32 %v25, 0.0
    %v28 = vmax.f32 %v26, 0.0
    %v29 = vadd.f32 %v27, 1.0
    %v30 = vlog2.pop %v29
    %v31 = vmul.f32 %v30, 0.6931472
    %v32 = vmul.f32 -0.5, %v27
    %v33 = vadd.f32 %v32, 1.0
    %v34 = vmul.f32 %v33, %v27
    %v35 = vand.u32 2147483647, %v27
    %vm36 = vcmp.lt.f32.partialorder %v35, 0.0004427343
    %v37 = vsel %vm36, %v34, %v31
    %v38 = vadd.f32 %v28, 1.0
    %v39 = vlog2.pop %v38
    %v40 = vmul.f32 %v39, 0.6931472
    %v41 = vmul.f32 -0.5, %v28
    %v42 = vadd.f32 %v41, 1.0
    %v43 = vmul.f32 %v42, %v28
    %v44 = vand.u32 2147483647, %v28
    %vm45 = vcmp.lt.f32.partialorder %v44, 0.0004427343
    %v46 = vsel %vm45, %v43, %v40
    %47 = vst [vmem:[#allocation5] sm:$0xff] %v37
    %48 = vst [vmem:[#allocation5 + $0x8] sm:$0xff] %v46
    // Predicated region
    $region10: #{tpu_custom_call.1} parent=1 // pred_check
      _
    $region11: #{tpu_custom_call.1} parent=1 // pred_check_branch
      %50 = sbr.rel (0) target = $region13
    $region12: #{tpu_custom_call.1} parent=1 // pred_region
      %52 = vsyncadd [#allocation4], 0
      %s53 = sshll.u32 [#allocation5], 4
      %s54 = int_to_ptr.vmem [resolvable:$true] %s53
      %s55 = sshll.u32 %s1, 4
      %s56 = int_to_ptr.hbm [resolvable:$true] %s55
      %61 = dma.vmem_to_hbm [thread:$0]  %s54, 256, %s56, [#allocation4], 128, 128, 8
    $region13: #{tpu_custom_call.1} parent=1 // pred_fallthru
      _
    // Predicated region
    $region14: #{tpu_custom_call.1} parent=1 // pred_check
      _
    $region15: #{tpu_custom_call.1} parent=1 // pred_check_branch
      %63 = sbr.rel (0) target = $region17
    $region16: #{tpu_custom_call.1} parent=1 // pred_region
      %65 = dma.done [#allocation4], 256
    $region17: #{tpu_custom_call.1} parent=1 // pred_fallthru
      _
    %66 = vsyncpa [#allocation3], 1
    %67 = vsyncpa [#allocation4], 1

</llo_original>
